<compile_context>
chip_gen: v6e
topology: v6e:2x2x1
jax: 0.10.0
libtpu: 0.0.40
codegen_flags: <defaults>
</compile_context>

<pallas_src>
import jax
import jax.numpy as jnp
from jax.experimental import pallas as pl
from jax.experimental.pallas import tpu as pltpu

HIDDEN = 5

# Lane-dense layout: batch is flattened into (rows, TILE_LANES) float32.
TILE_LANES = 512          # 4 x 128 lanes -> full-width unmasked vld/vst
MIN_BLOCK_ROWS = 8        # sublane granularity
MAX_BLOCK_ROWS = 1024     # 1024 x 512 f32 = 2 MiB per block; double-buffered
                          # in+out footprint ~8 MiB << v5e's 16 MiB default
TARGET_GRID_STEPS = 4     # keep >= 4 steps so v7x's 2 TCs + pipeline stay fed


def mlp_kernel(params_ref, x_ref, o_ref):
    """params_ref: SMEM (16,) f32 = [w1(5), b1(5), w2(5), b2(1)].
    x_ref/o_ref: VMEM (block_rows, TILE_LANES) f32 (lane-dense batch)."""
    x = x_ref[...]
    b2 = params_ref[3 * HIDDEN]                      # scalar
    acc = jnp.full_like(x, b2)
    # Statically unrolled over the 5 hidden units: pure VPU multiply-adds.
    # (No MXU: a 1->5->1 MLP would waste the systolic array on padding; the
    #  binding resource here is DMA/step overhead, not VALU.)
    for j in range(HIDDEN):
        w1_j = params_ref[j]
        b1_j = params_ref[HIDDEN + j]
        w2_j = params_ref[2 * HIDDEN + j]
        acc = acc + jnp.maximum(x * w1_j + b1_j, 0.0) * w2_j
    o_ref[...] = acc


def _choose_block_rows(rows):
    """Largest block (<= 2 MiB) that still leaves >= TARGET_GRID_STEPS grid
    steps when there is enough data. Halving keeps it a multiple of 8."""
    block = MAX_BLOCK_ROWS
    while block > MIN_BLOCK_ROWS and pl.cdiv(rows, block) < TARGET_GRID_STEPS:
        block //= 2
    return max(block, MIN_BLOCK_ROWS)


def model1_forward(x, w1, b1, w2, b2):
    """x: (B, 1) float32; w1: (1,5); b1: (5,); w2: (5,1); b2: (1,).
    Returns (B, 1) float32."""
    B = x.shape[0]
    xf = x.reshape(-1).astype(jnp.float32)           # (B,)

    rows = pl.cdiv(max(B, 1), TILE_LANES)            # 512-wide rows needed
    block_rows = _choose_block_rows(rows)
    num_tiles = pl.cdiv(rows, block_rows)
    padded_rows = num_tiles * block_rows
    padded = padded_rows * TILE_LANES

    # Only pay pad traffic when the batch is not already tile-aligned.
    if padded != B:
        xf = jnp.pad(xf, (0, padded - B))
    x2 = xf.reshape(padded_rows, TILE_LANES)         # (padded_rows, 512)

    # Pack all 16 parameters into one SMEM-resident vector (one tiny DMA).
    params = jnp.concatenate(
        [w1.reshape(-1), b1.reshape(-1), w2.reshape(-1), b2.reshape(-1)]
    ).astype(jnp.float32)                            # (16,)

    out2 = pl.pallas_call(
        mlp_kernel,
        out_shape=jax.ShapeDtypeStruct((padded_rows, TILE_LANES), jnp.float32),
        grid=(num_tiles,),
        in_specs=[
            pl.BlockSpec(memory_space=pltpu.MemorySpace.SMEM),          # params
            pl.BlockSpec((block_rows, TILE_LANES), lambda i: (i, 0)),   # x tile
        ],
        out_specs=pl.BlockSpec((block_rows, TILE_LANES), lambda i: (i, 0)),
        compiler_params=pltpu.CompilerParams(
            dimension_semantics=("parallel",)),
    )(params, x2)

    out = out2.reshape(-1)
    if padded != B:
        out = out[:B]                                # drop padding only if any
    return out.reshape(B, 1)


def init_params(key):
    # nn.Linear-style uniform(-1/sqrt(fan_in), 1/sqrt(fan_in)) init.
    k1, k2, k3, k4 = jax.random.split(key, 4)
    bound1 = 1.0                                  # fan_in = 1
    w1 = jax.random.uniform(k1, (1, HIDDEN), jnp.float32, -bound1, bound1)
    b1 = jax.random.uniform(k2, (HIDDEN,), jnp.float32, -bound1, bound1)
    bound2 = 1.0 / jnp.sqrt(float(HIDDEN))        # fan_in = 5
    w2 = jax.random.uniform(k3, (HIDDEN, 1), jnp.float32, -bound2, bound2)
    b2 = jax.random.uniform(k4, (1,), jnp.float32, -bound2, bound2)
    return w1, b1, w2, b2


def reference_forward(x, w1, b1, w2, b2):
    h = jnp.maximum(x @ w1 + b1, 0.0)
    return h @ w2 + b2


if __name__ == "__main__":
    key = jax.random.PRNGKey(0)
    kx, kp = jax.random.split(key)
    w1, b1, w2, b2 = init_params(kp)

    # Small primary example (the module takes (B, 1) inputs).
    B = 8
    x = jax.random.normal(kx, (B, 1), dtype=jnp.float32)
    out = jax.block_until_ready(model1_forward(x, w1, b1, w2, b2))
    ref = reference_forward(x, w1, b1, w2, b2)
    assert out.shape == (B, 1)
    assert jnp.allclose(out, ref, atol=1e-5, rtol=1e-5)

    # Extra coverage: ragged batch spanning several grid steps.
    B2 = 3 * 8 * TILE_LANES + 77      # not a multiple of the tile size
    x_big = jax.random.normal(jax.random.PRNGKey(1), (B2, 1), dtype=jnp.float32)
    out_big = jax.block_until_ready(model1_forward(x_big, w1, b1, w2, b2))
    ref_big = reference_forward(x_big, w1, b1, w2, b2)
    assert out_big.shape == (B2, 1)
    assert jnp.allclose(out_big, ref_big, atol=1e-5, rtol=1e-5)

    print("KERNEL_OK")
</pallas_src>

<mosaic_0001>
module attributes {stable_mosaic.version = 11 : i64} {
  func.func @mlp_kernel(%arg0: i32, %arg1: memref<16xf32, #tpu.memory_space<smem>>, %arg2: memref<8x512xf32, #tpu.memory_space<vmem>>, %arg3: memref<8x512xf32, #tpu.memory_space<vmem>>) attributes {dimension_semantics = [#tpu.dimension_semantics<parallel>], iteration_bounds = array<i64: 1>, scalar_prefetch = 0 : i64, scratch_operands = 0 : i64, tpu.core_type = #tpu.core_type<tc>, window_params = [{transform_indices = @transform_0, window_bounds = array<i64: 16>}, {transform_indices = @transform_1, window_bounds = array<i64: 8, 512>}, {transform_indices = @transform_2, window_bounds = array<i64: 8, 512>}]} {
    %c0 = arith.constant 0 : index
    %c0_0 = arith.constant 0 : index
    %0 = vector.load %arg2[%c0, %c0_0] : memref<8x512xf32, #tpu.memory_space<vmem>>, vector<8x512xf32>
    %c15 = arith.constant 15 : index
    %1 = memref.load %arg1[%c15] : memref<16xf32, #tpu.memory_space<smem>>
    %2 = vector.broadcast %1 : f32 to vector<8x512xf32>
    %c0_1 = arith.constant 0 : index
    %3 = memref.load %arg1[%c0_1] : memref<16xf32, #tpu.memory_space<smem>>
    %c5 = arith.constant 5 : index
    %4 = memref.load %arg1[%c5] : memref<16xf32, #tpu.memory_space<smem>>
    %c10 = arith.constant 10 : index
    %5 = memref.load %arg1[%c10] : memref<16xf32, #tpu.memory_space<smem>>
    %6 = vector.broadcast %3 : f32 to vector<8x512xf32>
    %7 = arith.mulf %0, %6 : vector<8x512xf32>
    %8 = vector.broadcast %4 : f32 to vector<8x512xf32>
    %9 = arith.addf %7, %8 : vector<8x512xf32>
    %cst = arith.constant 0.000000e+00 : f32
    %10 = vector.broadcast %cst : f32 to vector<8x512xf32>
    %11 = arith.maximumf %9, %10 : vector<8x512xf32>
    %12 = vector.broadcast %5 : f32 to vector<8x512xf32>
    %13 = arith.mulf %11, %12 : vector<8x512xf32>
    %14 = arith.addf %2, %13 : vector<8x512xf32>
    %c1 = arith.constant 1 : index
    %15 = memref.load %arg1[%c1] : memref<16xf32, #tpu.memory_space<smem>>
    %c6 = arith.constant 6 : index
    %16 = memref.load %arg1[%c6] : memref<16xf32, #tpu.memory_space<smem>>
    %c11 = arith.constant 11 : index
    %17 = memref.load %arg1[%c11] : memref<16xf32, #tpu.memory_space<smem>>
    %18 = vector.broadcast %15 : f32 to vector<8x512xf32>
    %19 = arith.mulf %0, %18 : vector<8x512xf32>
    %20 = vector.broadcast %16 : f32 to vector<8x512xf32>
    %21 = arith.addf %19, %20 : vector<8x512xf32>
    %cst_2 = arith.constant 0.000000e+00 : f32
    %22 = vector.broadcast %cst_2 : f32 to vector<8x512xf32>
    %23 = arith.maximumf %21, %22 : vector<8x512xf32>
    %24 = vector.broadcast %17 : f32 to vector<8x512xf32>
    %25 = arith.mulf %23, %24 : vector<8x512xf32>
    %26 = arith.addf %14, %25 : vector<8x512xf32>
    %c2 = arith.constant 2 : index
    %27 = memref.load %arg1[%c2] : memref<16xf32, #tpu.memory_space<smem>>
    %c7 = arith.constant 7 : index
    %28 = memref.load %arg1[%c7] : memref<16xf32, #tpu.memory_space<smem>>
    %c12 = arith.constant 12 : index
    %29 = memref.load %arg1[%c12] : memref<16xf32, #tpu.memory_space<smem>>
    %30 = vector.broadcast %27 : f32 to vector<8x512xf32>
    %31 = arith.mulf %0, %30 : vector<8x512xf32>
    %32 = vector.broadcast %28 : f32 to vector<8x512xf32>
    %33 = arith.addf %31, %32 : vector<8x512xf32>
    %cst_3 = arith.constant 0.000000e+00 : f32
    %34 = vector.broadcast %cst_3 : f32 to vector<8x512xf32>
    %35 = arith.maximumf %33, %34 : vector<8x512xf32>
    %36 = vector.broadcast %29 : f32 to vector<8x512xf32>
    %37 = arith.mulf %35, %36 : vector<8x512xf32>
    %38 = arith.addf %26, %37 : vector<8x512xf32>
    %c3 = arith.constant 3 : index
    %39 = memref.load %arg1[%c3] : memref<16xf32, #tpu.memory_space<smem>>
    %c8 = arith.constant 8 : index
    %40 = memref.load %arg1[%c8] : memref<16xf32, #tpu.memory_space<smem>>
    %c13 = arith.constant 13 : index
    %41 = memref.load %arg1[%c13] : memref<16xf32, #tpu.memory_space<smem>>
    %42 = vector.broadcast %39 : f32 to vector<8x512xf32>
    %43 = arith.mulf %0, %42 : vector<8x512xf32>
    %44 = vector.broadcast %40 : f32 to vector<8x512xf32>
    %45 = arith.addf %43, %44 : vector<8x512xf32>
    %cst_4 = arith.constant 0.000000e+00 : f32
    %46 = vector.broadcast %cst_4 : f32 to vector<8x512xf32>
    %47 = arith.maximumf %45, %46 : vector<8x512xf32>
    %48 = vector.broadcast %41 : f32 to vector<8x512xf32>
    %49 = arith.mulf %47, %48 : vector<8x512xf32>
    %50 = arith.addf %38, %49 : vector<8x512xf32>
    %c4 = arith.constant 4 : index
    %51 = memref.load %arg1[%c4] : memref<16xf32, #tpu.memory_space<smem>>
    %c9 = arith.constant 9 : index
    %52 = memref.load %arg1[%c9] : memref<16xf32, #tpu.memory_space<smem>>
    %c14 = arith.constant 14 : index
    %53 = memref.load %arg1[%c14] : memref<16xf32, #tpu.memory_space<smem>>
    %54 = vector.broadcast %51 : f32 to vector<8x512xf32>
    %55 = arith.mulf %0, %54 : vector<8x512xf32>
    %56 = vector.broadcast %52 : f32 to vector<8x512xf32>
    %57 = arith.addf %55, %56 : vector<8x512xf32>
    %cst_5 = arith.constant 0.000000e+00 : f32
    %58 = vector.broadcast %cst_5 : f32 to vector<8x512xf32>
    %59 = arith.maximumf %57, %58 : vector<8x512xf32>
    %60 = vector.broadcast %53 : f32 to vector<8x512xf32>
    %61 = arith.mulf %59, %60 : vector<8x512xf32>
    %62 = arith.addf %50, %61 : vector<8x512xf32>
    %c0_6 = arith.constant 0 : index
    %c0_7 = arith.constant 0 : index
    %63 = vector.load %arg3[%c0_6, %c0_7] : memref<8x512xf32, #tpu.memory_space<vmem>>, vector<8x512xf32>
    tpu.vector_store %arg3[%c0_6, %c0_7], %62 {strides = array<i32>} : memref<8x512xf32, #tpu.memory_space<vmem>>, vector<8x512xf32>,
    return
  }
  func.func @transform_0(%arg0: i32) -> i32 {
    %c0_i32 = arith.constant 0 : i32
    %c0_i32_0 = arith.constant 0 : i32
    return %c0_i32 : i32
  }
  func.func @transform_1(%arg0: i32) -> (i32, i32) {
    %c0_i32 = arith.constant 0 : i32
    %c0_i32_0 = arith.constant 0 : i32
    return %arg0, %c0_i32 : i32, i32
  }
  func.func @transform_2(%arg0: i32) -> (i32, i32) {
    %c0_i32 = arith.constant 0 : i32
    %c0_i32_0 = arith.constant 0 : i32
    return %arg0, %c0_i32 : i32, i32
  }
}

</mosaic_0001>

<llo_original>
// kernel: tpu_custom_call.1
$region0: #{tpu_custom_call.1}
  #allocation0 [shape = 'u32[]', space=smem, size = 0x4, offset = 0x4, fixed_abs, tag = 'smem constant byte address 0x4 - core index']
  #allocation1 [shape = 'u32[144,128]{1,0:T(1,128)}', space=vmem, size = 0x12000, scoped, tag = 'internal scratch']
  %s0 = inlined_call_operand.hbm [shape: f32[16], index: 0, kind: input, shape index: {}]
  %s1 = inlined_call_operand.hbm [shape: f32[8,512], index: 1, kind: input, shape index: {}]
  %s2 = inlined_call_operand.hbm [shape: f32[8,512], index: 2, kind: output, shape index: {}]
  %s3 = sld [smem:[#allocation0]]
  $region26: #{tpu_custom_call.1} parent=0
    _
  %s5 = ssub.s32 1, %s3
  %s6 = scalar_select 0, %s5, %s3
  $region1: #{tpu_custom_call.1} parent=0
    #allocation2 [shape = 'u8[512]{0}', space=smem, size = 0x200, scoped, tag = 'input window, operand 0, single buffered']
    #allocation3 [shape = 's32[1]{0}', space=sflag, size = 0x4, scoped, tag = 'scoped memory for tpu_custom_call.1']
    #allocation4 [shape = 's32[1]{0}', space=sflag, size = 0x4, scoped, tag = 'scoped memory for tpu_custom_call.1']
    #allocation5 [shape = 's32[1]{0}', space=sflag, size = 0x4, scoped, tag = 'scoped memory for tpu_custom_call.1']
    #allocation6 [shape = 'u8[16384]{0}', space=vmem, size = 0x4000, scoped, tag = 'input window, operand 1, single buffered']
    #allocation7 [shape = 'u8[16384]{0}', space=vmem, size = 0x4000, scoped, tag = 'output window, operand 0, single buffered']
    %7 = vsyncpa [#allocation5], 0
    %8 = vsyncpa [#allocation3], 0
    %9 = vsyncpa [#allocation4], 0
    // Predicated region
    $region2: #{tpu_custom_call.1} parent=1 // pred_check
      _
    $region3: #{tpu_custom_call.1} parent=1 // pred_check_branch
      %11 = sbr.rel (0) target = $region5
    $region4: #{tpu_custom_call.1} parent=1 // pred_region
      %s13 = ssub.s32 16, 16
      %14 = vsyncadd [#allocation5], %s13
      %17 = dma.hbm_to_smem %s0, 16, [#allocation2], [#allocation5]
    $region5: #{tpu_custom_call.1} parent=1 // pred_fallthru
      _
    // Predicated region
    $region6: #{tpu_custom_call.1} parent=1 // pred_check
      _
    $region7: #{tpu_custom_call.1} parent=1 // pred_check_branch
      %19 = sbr.rel (0) target = $region9
    $region8: #{tpu_custom_call.1} parent=1 // pred_region
      %s21 = ssub.s32 512, 512
      %22 = vsyncadd [#allocation3], %s21
      %s24 = sshll.u32 [#allocation6], 4
      %s25 = int_to_ptr.vmem [resolvable:$true] %s24
      %27 = dma.hbm_to_vmem [thread:$0]  %s1, 512, %s25, [#allocation3]
    $region9: #{tpu_custom_call.1} parent=1 // pred_fallthru
      _
    // Predicated region
    $region10: #{tpu_custom_call.1} parent=1 // pred_check
      _
    $region11: #{tpu_custom_call.1} parent=1 // pred_check_branch
      %29 = sbr.rel (0) target = $region13
    $region12: #{tpu_custom_call.1} parent=1 // pred_region
      %30 = dma.done [#allocation5], 16
    $region13: #{tpu_custom_call.1} parent=1 // pred_fallthru
      _
    // Predicated region
    $region14: #{tpu_custom_call.1} parent=1 // pred_check
      _
    $region15: #{tpu_custom_call.1} parent=1 // pred_check_branch
      %32 = sbr.rel (0) target = $region17
    $region16: #{tpu_custom_call.1} parent=1 // pred_region
      %33 = dma.done [#allocation3], 512
    $region17: #{tpu_custom_call.1} parent=1 // pred_fallthru
      _
    %34 = sfence
    %v35 = vld [vmem:[#allocation6] sm:$0xff]
    %v36 = vld [vmem:[#allocation6 + $0x8] sm:$0xff]
    %v37 = vld [vmem:[#allocation6 + $0x10] sm:$0xff]
    %v38 = vld [vmem:[#allocation6 + $0x18] sm:$0xff]
    %s39 = sld [smem:[#allocation2 + $0xf]]
    %v40 = vstv %s39
    %s41 = sld [smem:[#allocation2]]
    %s42 = sld [smem:[#allocation2 + $0x5]]
    %s43 = sld [smem:[#allocation2 + $0xa]]
    %v44 = vstv %s41
    %v45 = vmul.f32 %v35, %v44
    %v46 = vmul.f32 %v36, %v44
    %v47 = vmul.f32 %v37, %v44
    %v48 = vmul.f32 %v38, %v44
    %v49 = vstv %s42
    %v50 = vadd.f32 %v45, %v49
    %v51 = vadd.f32 %v46, %v49
    %v52 = vadd.f32 %v47, %v49
    %v53 = vadd.f32 %v48, %v49
    %v54 = vmax.f32 %v50, 0.0
    %v55 = vmax.f32 %v51, 0.0
    %v56 = vmax.f32 %v52, 0.0
    %v57 = vmax.f32 %v53, 0.0
    %v58 = vstv %s43
    %v59 = vmul.f32 %v54, %v58
    %v60 = vmul.f32 %v55, %v58
    %v61 = vmul.f32 %v56, %v58
    %v62 = vmul.f32 %v57, %v58
    %v63 = vadd.f32 %v40, %v59
    %v64 = vadd.f32 %v40, %v60
    %v65 = vadd.f32 %v40, %v61
    %v66 = vadd.f32 %v40, %v62
    %s67 = sld [smem:[#allocation2 + $0x1]]
    %s68 = sld [smem:[#allocation2 + $0x6]]
    %s69 = sld [smem:[#allocation2 + $0xb]]
    %v70 = vstv %s67
    %v71 = vmul.f32 %v35, %v70
    %v72 = vmul.f32 %v36, %v70
    %v73 = vmul.f32 %v37, %v70
    %v74 = vmul.f32 %v38, %v70
    %v75 = vstv %s68
    %v76 = vadd.f32 %v71, %v75
    %v77 = vadd.f32 %v72, %v75
    %v78 = vadd.f32 %v73, %v75
    %v79 = vadd.f32 %v74, %v75
    %v80 = vmax.f32 %v76, 0.0
    %v81 = vmax.f32 %v77, 0.0
    %v82 = vmax.f32 %v78, 0.0
    %v83 = vmax.f32 %v79, 0.0
    %v84 = vstv %s69
    %v85 = vmul.f32 %v80, %v84
    %v86 = vmul.f32 %v81, %v84
    %v87 = vmul.f32 %v82, %v84
    %v88 = vmul.f32 %v83, %v84
    %v89 = vadd.f32 %v63, %v85
    %v90 = vadd.f32 %v64, %v86
    %v91 = vadd.f32 %v65, %v87
    %v92 = vadd.f32 %v66, %v88
    %s93 = sld [smem:[#allocation2 + $0x2]]
    %s94 = sld [smem:[#allocation2 + $0x7]]
    %s95 = sld [smem:[#allocation2 + $0xc]]
    %v96 = vstv %s93
    %v97 = vmul.f32 %v35, %v96
    %v98 = vmul.f32 %v36, %v96
    %v99 = vmul.f32 %v37, %v96
    %v100 = vmul.f32 %v38, %v96
    %v101 = vstv %s94
    %v102 = vadd.f32 %v97, %v101
    %v103 = vadd.f32 %v98, %v101
    %v104 = vadd.f32 %v99, %v101
    %v105 = vadd.f32 %v100, %v101
    %v106 = vmax.f32 %v102, 0.0
    %v107 = vmax.f32 %v103, 0.0
    %v108 = vmax.f32 %v104, 0.0
    %v109 = vmax.f32 %v105, 0.0
    %v110 = vstv %s95
    %v111 = vmul.f32 %v106, %v110
    %v112 = vmul.f32 %v107, %v110
    %v113 = vmul.f32 %v108, %v110
    %v114 = vmul.f32 %v109, %v110
    %v115 = vadd.f32 %v89, %v111
    %v116 = vadd.f32 %v90, %v112
    %v117 = vadd.f32 %v91, %v113
    %v118 = vadd.f32 %v92, %v114
    %s119 = sld [smem:[#allocation2 + $0x3]]
    %s120 = sld [smem:[#allocation2 + $0x8]]
    %s121 = sld [smem:[#allocation2 + $0xd]]
    %v122 = vstv %s119
    %v123 = vmul.f32 %v35, %v122
    %v124 = vmul.f32 %v36, %v122
    %v125 = vmul.f32 %v37, %v122
    %v126 = vmul.f32 %v38, %v122
    %v127 = vstv %s120
    %v128 = vadd.f32 %v123, %v127
    %v129 = vadd.f32 %v124, %v127
    %v130 = vadd.f32 %v125, %v127
    %v131 = vadd.f32 %v126, %v127
    %v132 = vmax.f32 %v128, 0.0
    %v133 = vmax.f32 %v129, 0.0
    %v134 = vmax.f32 %v130, 0.0
    %v135 = vmax.f32 %v131, 0.0
    %v136 = vstv %s121
    %v137 = vmul.f32 %v132, %v136
    %v138 = vmul.f32 %v133, %v136
    %v139 = vmul.f32 %v134, %v136
    %v140 = vmul.f32 %v135, %v136
    %v141 = vadd.f32 %v115, %v137
    %v142 = vadd.f32 %v116, %v138
    %v143 = vadd.f32 %v117, %v139
    %v144 = vadd.f32 %v118, %v140
    %s145 = sld [smem:[#allocation2 + $0x4]]
    %s146 = sld [smem:[#allocation2 + $0x9]]
    %s147 = sld [smem:[#allocation2 + $0xe]]
    %v148 = vstv %s145
    %v149 = vmul.f32 %v35, %v148
    %v150 = vmul.f32 %v36, %v148
    %v151 = vmul.f32 %v37, %v148
    %v152 = vmul.f32 %v38, %v148
    %v153 = vstv %s146
    %v154 = vadd.f32 %v149, %v153
    %v155 = vadd.f32 %v150, %v153
    %v156 = vadd.f32 %v151, %v153
    %v157 = vadd.f32 %v152, %v153
    %v158 = vmax.f32 %v154, 0.0
    %v159 = vmax.f32 %v155, 0.0
    %v160 = vmax.f32 %v156, 0.0
    %v161 = vmax.f32 %v157, 0.0
    %v162 = vstv %s147
    %v163 = vmul.f32 %v158, %v162
    %v164 = vmul.f32 %v159, %v162
    %v165 = vmul.f32 %v160, %v162
    %v166 = vmul.f32 %v161, %v162
    %v167 = vadd.f32 %v141, %v163
    %v168 = vadd.f32 %v142, %v164
    %v169 = vadd.f32 %v143, %v165
    %v170 = vadd.f32 %v144, %v166
    %171 = vst [vmem:[#allocation7] sm:$0xff] %v167
    %172 = vst [vmem:[#allocation7 + $0x8] sm:$0xff] %v168
    %173 = vst [vmem:[#allocation7 + $0x10] sm:$0xff] %v169
    %174 = vst [vmem:[#allocation7 + $0x18] sm:$0xff] %v170
    // Predicated region
    $region18: #{tpu_custom_call.1} parent=1 // pred_check
      _
    $region19: #{tpu_custom_call.1} parent=1 // pred_check_branch
      %176 = sbr.rel (0) target = $region21
    $region20: #{tpu_custom_call.1} parent=1 // pred_region
      %s178 = ssub.s32 512, 512
      %179 = vsyncadd [#allocation4], %s178
      %s181 = sshll.u32 [#allocation7], 4
      %s182 = int_to_ptr.vmem [resolvable:$true] %s181
      %184 = dma.vmem_to_hbm [thread:$0]  %s182, 512, %s2, [#allocation4]
    $region21: #{tpu_custom_call.1} parent=1 // pred_fallthru
      _
    // Predicated region
    $region22: #{tpu_custom_call.1} parent=1 // pred_check
      _
    $region23: #{tpu_custom_call.1} parent=1 // pred_check_branch
      %186 = sbr.rel (0) target = $region25
    $region24: #{tpu_custom_call.1} parent=1 // pred_region
      %187 = dma.done [#allocation4], 512
    $region25: #{tpu_custom_call.1} parent=1 // pred_fallthru
      _
    %188 = vsyncpa [#allocation3], 1
    %189 = vsyncpa [#allocation4], 1
    %190 = vsyncpa [#allocation5], 1

</llo_original>
